<compile_context>
chip_gen: v7x
topology: tpu7x:2x2x1
jax: 0.10.0
libtpu: 0.0.40
codegen_flags: <defaults>
</compile_context>

<pallas_src>
import functools

import jax
import jax.numpy as jnp
from jax.experimental import pallas as pl
from jax.experimental.pallas import tpu as pltpu

LANES = 128
SUBLANES = 8
PER_TILE = SUBLANES * LANES          # 1024 elements = one (8, 128) f32 vreg
MAX_ROW_TILE = 8192                  # (8192, 128) f32 tile = 4 MiB per input
MIN_ROWS_FOR_SPLIT = 128             # force >= 2 grid blocks above this (v7x megacore)
VMEM_LIMIT_BYTES = 32 * 1024 * 1024  # fits 2 inputs x 2 buffers x 4 MiB everywhere


def _sigmoid_f32(x):
    # exp rides the EUP; the divide becomes an approx reciprocal on the EUP too,
    # leaving the VALU slots for the compare/select/reduce work.
    e = jnp.exp(jnp.minimum(-x, 60.0))   # clamp: avoid inf into the approx recip
    return pl.reciprocal(1.0 + e, approx=True)


def _ldl_partial_kernel(x_ref, lab_ref, part_ref, *, total_rows, num_blocks, need_mask):
    """Per-block masked partial sums.

    part_ref block layout (1, 8, LANES) (one full unmasked (8,128) store), per lane:
      row 0: sum of sigmoid(x) over labeled-positive elements
      row 1: count of labeled-positive elements
      row 2: sum of sigmoid(x) over unlabeled elements
      row 3: count of unlabeled elements
      rows 4..7: zeros (padding so the store is lane/sublane dense)
    """
    i = pl.program_id(0)
    x = x_ref[...].astype(jnp.float32)    # per-tile upcast: bf16 logits stay bf16 in HBM
    lab = lab_ref[...]                    # caller dtype; 1 = positive, 0 = unlabeled
    s = _sigmoid_f32(x)
    is_p = lab == 1
    is_u = lab == 0

    def reduce_and_store(p_mask, u_mask):
        # jnp.where (not mask-multiply) so garbage/NaN rows cannot leak in.
        sum_p = jnp.sum(jnp.where(p_mask, s, 0.0), axis=0, keepdims=True)
        cnt_p = jnp.sum(jnp.where(p_mask, 1.0, 0.0), axis=0, keepdims=True)
        sum_u = jnp.sum(jnp.where(u_mask, s, 0.0), axis=0, keepdims=True)
        cnt_u = jnp.sum(jnp.where(u_mask, 1.0, 0.0), axis=0, keepdims=True)
        part_ref[0] = jnp.concatenate(
            [sum_p, cnt_p, sum_u, cnt_u, jnp.zeros((4, LANES), jnp.float32)], axis=0)

    if need_mask:
        # Only the ragged LAST grid block reads past the true row count; predicate
        # the row mask so every other block takes the cheap unmasked path.
        row_tile = x.shape[0]
        is_last = i == num_blocks - 1

        @pl.when(is_last)
        def _():
            rows = jax.lax.broadcasted_iota(jnp.int32, x.shape, 0) + i * row_tile
            valid = rows < total_rows
            reduce_and_store(jnp.logical_and(is_p, valid),
                             jnp.logical_and(is_u, valid))

        @pl.when(jnp.logical_not(is_last))
        def _():
            reduce_and_store(is_p, is_u)
    else:
        reduce_and_store(is_p, is_u)


@functools.partial(jax.jit, static_argnames=("prior", "tmpr", "alpha_U"))
def label_distribution_loss(outputs, labels, ema, ema_valid, *, prior,
                            tmpr=1.0, alpha_U=0.9):
    """Returns (loss, new_ema, new_ema_valid); everything stays on device."""
    x = outputs.reshape(-1)               # native dtype, reshape is free
    lab = labels.reshape(-1)              # native dtype; classified in-kernel
    if lab.dtype == jnp.bool_:
        lab = lab.astype(jnp.int8)        # bool can't hold the pad value
    n = x.shape[0]

    if n % PER_TILE != 0:
        # Rare ragged-size path: one pad pass.  Labels padded with 2 -> the pad
        # region is "neither positive nor unlabeled", so no element mask needed.
        n_pad = pl.cdiv(n, PER_TILE) * PER_TILE
        x = jnp.pad(x, (0, n_pad - n))
        lab = jnp.pad(lab, (0, n_pad - n), constant_values=2)
        n = n_pad

    R = n // LANES                        # number of 128-lane rows (multiple of 8)
    num_blocks = pl.cdiv(R, MAX_ROW_TILE)
    if R >= MIN_ROWS_FOR_SPLIT:
        num_blocks = max(num_blocks, 2)   # keep both v7x TensorCores busy
    row_tile = pl.cdiv(pl.cdiv(R, num_blocks), SUBLANES) * SUBLANES
    num_blocks = pl.cdiv(R, row_tile)
    need_mask = (num_blocks * row_tile) != R   # ragged last grid block

    x2 = x.reshape(R, LANES)
    lab2 = lab.reshape(R, LANES)

    kernel = functools.partial(_ldl_partial_kernel, total_rows=R,
                               num_blocks=num_blocks, need_mask=need_mask)

    in_tile = pl.BlockSpec((row_tile, LANES), lambda i: (i, 0))
    out_tile = pl.BlockSpec((1, SUBLANES, LANES), lambda i: (i, 0, 0))

    in_bytes = x2.size * x2.dtype.itemsize + lab2.size * lab2.dtype.itemsize
    out_bytes = num_blocks * SUBLANES * LANES * 4
    cost = pl.CostEstimate(flops=14 * x2.size,
                           transcendentals=2 * x2.size,
                           bytes_accessed=in_bytes + out_bytes)

    partials = pl.pallas_call(
        kernel,
        out_shape=jax.ShapeDtypeStruct((num_blocks, SUBLANES, LANES), jnp.float32),
        grid_spec=pltpu.PrefetchScalarGridSpec(
            num_scalar_prefetch=0,
            grid=(num_blocks,),
            in_specs=[in_tile, in_tile],
            out_specs=out_tile),
        compiler_params=pltpu.CompilerParams(
            dimension_semantics=("parallel",),
            vmem_limit_bytes=VMEM_LIMIT_BYTES),
        cost_estimate=cost,
    )(x2, lab2)

    # Tiny scalar tail in plain JAX: reduce (num_blocks, 8, 128) -> (8,).
    sums = jnp.sum(partials, axis=(0, 2))
    sum_P, cnt_P, sum_U, cnt_U = sums[0], sums[1], sums[2], sums[3]

    ema = jnp.asarray(ema, jnp.float32)
    ema_valid = jnp.asarray(ema_valid, jnp.bool_)

    # exp_y_P == 1.0, so R_L = mean(1 - mean(scores_P)) = 1 - mean(scores_P)
    mean_P = sum_P / jnp.maximum(cnt_P, 1.0)
    R_L = jnp.where(cnt_P > 0.0, 1.0 - mean_P, 0.0)

    mean_U = sum_U / jnp.maximum(cnt_U, 1.0)
    # first forward vs second_forward (EMA) selected on device via ema_valid.
    exp_U = jnp.where(ema_valid, alpha_U * ema + (1.0 - alpha_U) * mean_U, mean_U)

    # softplus_loss(x1, x2) with scalar diff; F.softplus(x, beta) = softplus(beta*x)/beta.
    diff = exp_U - prior
    sp = (jax.nn.softplus(tmpr * diff) + jax.nn.softplus(-tmpr * diff)) / tmpr
    R_U = jnp.where(cnt_U > 0.0, sp, 0.0)
    R_U = jnp.where(ema_valid, R_U / (1.0 - alpha_U), R_U)

    loss = 2.0 * prior * R_L + R_U
    new_ema = jnp.where(cnt_U > 0.0, exp_U, ema)
    new_valid = jnp.logical_or(ema_valid, cnt_U > 0.0)
    return loss, new_ema, new_valid


class LabelDistributionLossWithEMA:
    """Python wrapper mirroring the PyTorch module's stateful behaviour.

    The forward -> second_forward switch and the exp_y_hat_U_ema buffer are kept
    as device-resident (ema, ema_valid) state, so __call__ never syncs to host.
    """

    def __init__(self, prior, dist='softplus', tmpr=1, alpha_U=0.9):
        if dist != 'softplus':
            raise NotImplementedError(
                'The distance function: {} is not defined!'.format(dist))
        self.prior = float(prior)
        self.tmpr = float(tmpr)
        self.alpha_U = float(alpha_U)
        self.exp_y_hat_U_ema = jnp.zeros((), jnp.float32)   # valid iff _ema_valid
        self._ema_valid = jnp.zeros((), jnp.bool_)

    def __call__(self, outputs, labels):
        loss, new_ema, new_valid = label_distribution_loss(
            outputs, labels, self.exp_y_hat_U_ema, self._ema_valid,
            prior=self.prior, tmpr=self.tmpr, alpha_U=self.alpha_U)
        self.exp_y_hat_U_ema = new_ema
        self._ema_valid = new_valid
        return loss


if __name__ == "__main__":
    key = jax.random.PRNGKey(0)
    k1, k2, k3 = jax.random.split(key, 3)

    N = 256
    prior = 0.3
    outputs = jax.random.normal(k1, (N, 1), dtype=jnp.float32)
    labels = (jax.random.uniform(k2, (N,)) < 0.3).astype(jnp.float32)

    loss_fn = LabelDistributionLossWithEMA(prior)

    # --- first forward (kernel) ---
    loss1 = loss_fn(outputs, labels)
    jax.block_until_ready(loss1)

    # --- pure-JAX reference for first forward ---
    s = jax.nn.sigmoid(outputs.reshape(-1))
    lab = labels.reshape(-1)
    mP = lab == 1.0
    mU = lab == 0.0
    mean_P = jnp.sum(jnp.where(mP, s, 0.0)) / jnp.sum(mP)
    mean_U = jnp.sum(jnp.where(mU, s, 0.0)) / jnp.sum(mU)
    R_L = 1.0 - mean_P
    d = mean_U - prior
    R_U = jax.nn.softplus(d) + jax.nn.softplus(-d)
    ref1 = 2.0 * prior * R_L + R_U
    # tolerance loosened vs exact sigmoid because of the approx EUP reciprocal
    assert abs(float(loss1) - float(ref1)) < 5e-3, (float(loss1), float(ref1))

    # --- second forward exercises the on-device EMA path (second_forward) ---
    outputs2 = jax.random.normal(k3, (N, 1), dtype=jnp.float32)
    loss2 = loss_fn(outputs2, labels)
    jax.block_until_ready(loss2)

    s2 = jax.nn.sigmoid(outputs2.reshape(-1))
    mean_P2 = jnp.sum(jnp.where(mP, s2, 0.0)) / jnp.sum(mP)
    mean_U2 = jnp.sum(jnp.where(mU, s2, 0.0)) / jnp.sum(mU)
    exp_U2 = 0.9 * mean_U + 0.1 * mean_U2
    d2 = exp_U2 - prior
    R_U2 = jax.nn.softplus(d2) + jax.nn.softplus(-d2)
    ref2 = 2.0 * prior * (1.0 - mean_P2) + R_U2 / 0.1
    assert abs(float(loss2) - float(ref2)) < 5e-3, (float(loss2), float(ref2))

    print("KERNEL_OK")
</pallas_src>

<mosaic_0001>
module attributes {stable_mosaic.version = 11 : i64} {
  func.func @_ldl_partial_kernel(%arg0: i32, %arg1: memref<8x128xf32, #tpu.memory_space<vmem>>, %arg2: memref<8x128xf32, #tpu.memory_space<vmem>>, %arg3: memref<1x8x128xf32, #tpu.memory_space<vmem>>) attributes {dimension_semantics = [#tpu.dimension_semantics<parallel>], iteration_bounds = array<i64: 1>, scalar_prefetch = 0 : i64, scratch_operands = 0 : i64, tpu.core_type = #tpu.core_type<tc>, window_params = [{transform_indices = @transform_0, window_bounds = array<i64: 8, 128>}, {transform_indices = @transform_1, window_bounds = array<i64: 8, 128>}, {transform_indices = @transform_2, window_bounds = array<i64: 1, 8, 128>}]} {
    %c0 = arith.constant 0 : index
    %c0_0 = arith.constant 0 : index
    %0 = vector.load %arg1[%c0, %c0_0] : memref<8x128xf32, #tpu.memory_space<vmem>>, vector<8x128xf32>
    %c0_1 = arith.constant 0 : index
    %c0_2 = arith.constant 0 : index
    %1 = vector.load %arg2[%c0_1, %c0_2] : memref<8x128xf32, #tpu.memory_space<vmem>>, vector<8x128xf32>
    %cst = arith.constant 0.000000e+00 : f32
    %2 = vector.broadcast %cst : f32 to vector<8x128xf32>
    %3 = arith.subf %2, %0 : vector<8x128xf32>
    %cst_3 = arith.constant 6.000000e+01 : f32
    %4 = vector.broadcast %cst_3 : f32 to vector<8x128xf32>
    %5 = arith.minimumf %3, %4 : vector<8x128xf32>
    %6 = math.exp %5 : vector<8x128xf32>
    %cst_4 = arith.constant 1.000000e+00 : f32
    %7 = vector.broadcast %cst_4 : f32 to vector<8x128xf32>
    %8 = arith.addf %7, %6 : vector<8x128xf32>
    %9 = tpu.reciprocal %8 {approx = true} : vector<8x128xf32> -> vector<8x128xf32>
    %cst_5 = arith.constant 1.000000e+00 : f32
    %10 = vector.broadcast %cst_5 : f32 to vector<8x128xf32>
    %11 = arith.cmpf oeq, %1, %10 : vector<8x128xf32>
    %cst_6 = arith.constant 0.000000e+00 : f32
    %12 = vector.broadcast %cst_6 : f32 to vector<8x128xf32>
    %13 = arith.cmpf oeq, %1, %12 : vector<8x128xf32>
    %cst_7 = arith.constant 0.000000e+00 : f32
    %14 = vector.broadcast %cst_7 : f32 to vector<8x128xf32>
    %15 = arith.select %11, %9, %14 : vector<8x128xi1>, vector<8x128xf32>
    %cst_8 = arith.constant dense<0.000000e+00> : vector<128xf32>
    %16 = vector.multi_reduction <add>, %15, %cst_8 [0] : vector<8x128xf32> to vector<128xf32>
    %17 = vector.shape_cast %16 : vector<128xf32> to vector<1x128xf32>
    %cst_9 = arith.constant 1.000000e+00 : f32
    %cst_10 = arith.constant 0.000000e+00 : f32
    %18 = vector.broadcast %cst_9 : f32 to vector<8x128xf32>
    %19 = vector.broadcast %cst_10 : f32 to vector<8x128xf32>
    %20 = arith.select %11, %18, %19 : vector<8x128xi1>, vector<8x128xf32>
    %cst_11 = arith.constant dense<0.000000e+00> : vector<128xf32>
    %21 = vector.multi_reduction <add>, %20, %cst_11 [0] : vector<8x128xf32> to vector<128xf32>
    %22 = vector.shape_cast %21 : vector<128xf32> to vector<1x128xf32>
    %cst_12 = arith.constant 0.000000e+00 : f32
    %23 = vector.broadcast %cst_12 : f32 to vector<8x128xf32>
    %24 = arith.select %13, %9, %23 : vector<8x128xi1>, vector<8x128xf32>
    %cst_13 = arith.constant dense<0.000000e+00> : vector<128xf32>
    %25 = vector.multi_reduction <add>, %24, %cst_13 [0] : vector<8x128xf32> to vector<128xf32>
    %26 = vector.shape_cast %25 : vector<128xf32> to vector<1x128xf32>
    %cst_14 = arith.constant 1.000000e+00 : f32
    %cst_15 = arith.constant 0.000000e+00 : f32
    %27 = vector.broadcast %cst_14 : f32 to vector<8x128xf32>
    %28 = vector.broadcast %cst_15 : f32 to vector<8x128xf32>
    %29 = arith.select %13, %27, %28 : vector<8x128xi1>, vector<8x128xf32>
    %cst_16 = arith.constant dense<0.000000e+00> : vector<128xf32>
    %30 = vector.multi_reduction <add>, %29, %cst_16 [0] : vector<8x128xf32> to vector<128xf32>
    %31 = vector.shape_cast %30 : vector<128xf32> to vector<1x128xf32>
    %cst_17 = arith.constant 0.000000e+00 : f32
    %32 = vector.broadcast %cst_17 : f32 to vector<4x128xf32>
    %33 = tpu.concatenate %17, %22, %26, %31, %32 in 0 : vector<1x128xf32>, vector<1x128xf32>, vector<1x128xf32>, vector<1x128xf32>, vector<4x128xf32> -> vector<8x128xf32>
    %c0_18 = arith.constant 0 : index
    %c0_19 = arith.constant 0 : index
    %c0_20 = arith.constant 0 : index
    %34 = vector.load %arg3[%c0_18, %c0_19, %c0_20] : memref<1x8x128xf32, #tpu.memory_space<vmem>>, vector<1x8x128xf32>
    %35 = vector.shape_cast %34 : vector<1x8x128xf32> to vector<8x128xf32>
    %36 = vector.shape_cast %33 : vector<8x128xf32> to vector<1x8x128xf32>
    tpu.vector_store %arg3[%c0_18, %c0_19, %c0_20], %36 {strides = array<i32>} : memref<1x8x128xf32, #tpu.memory_space<vmem>>, vector<1x8x128xf32>,
    return
  }
  func.func @transform_0(%arg0: i32) -> (i32, i32) {
    %c0_i32 = arith.constant 0 : i32
    %c0_i32_0 = arith.constant 0 : i32
    return %arg0, %c0_i32 : i32, i32
  }
  func.func @transform_1(%arg0: i32) -> (i32, i32) {
    %c0_i32 = arith.constant 0 : i32
    %c0_i32_0 = arith.constant 0 : i32
    return %arg0, %c0_i32 : i32, i32
  }
  func.func @transform_2(%arg0: i32) -> (i32, i32, i32) {
    %c0_i32 = arith.constant 0 : i32
    %c0_i32_0 = arith.constant 0 : i32
    %c0_i32_1 = arith.constant 0 : i32
    return %arg0, %c0_i32, %c0_i32_0 : i32, i32, i32
  }
}

</mosaic_0001>

<llo_original>
// kernel: label_distribution_loss.1
$region0: #{label_distribution_loss.1}
  #allocation0 [shape = 'u32[]', space=smem, size = 0x4, offset = 0x4, fixed_abs, tag = 'smem constant byte address 0x4 - core index']
  #allocation1 [shape = 'u32[144,128]{1,0:T(1,128)}', space=vmem, size = 0x12000, scoped, tag = 'internal scratch']
  %s0 = inlined_call_operand.vmem [shape: f32[8,128], index: 0, kind: input, shape index: {}]
  %s1 = inlined_call_operand.vmem [shape: f32[8,128], index: 1, kind: input, shape index: {}]
  %s2 = inlined_call_operand.vmem [shape: f32[1,8,128], index: 2, kind: output, shape index: {}]
  %s3 = sld [smem:[#allocation0]]
  $region18: #{label_distribution_loss.1} parent=0
    _
  %s5 = ssub.s32 1, %s3
  %s6 = scalar_select 0, %s5, %s3
  // Predicated region
  $region2: #{label_distribution_loss.1} parent=0 // pred_check
    _
  $region3: #{label_distribution_loss.1} parent=0 // pred_check_branch
    %8 = sbr.rel (0) target = $region5
  $region4: #{label_distribution_loss.1} parent=0 // pred_region
    _
  $region5: #{label_distribution_loss.1} parent=0 // pred_fallthru
    _
  // Predicated region
  $region6: #{label_distribution_loss.1} parent=0 // pred_check
    _
  $region7: #{label_distribution_loss.1} parent=0 // pred_check_branch
    %10 = sbr.rel (0) target = $region9
  $region8: #{label_distribution_loss.1} parent=0 // pred_region
    _
  $region9: #{label_distribution_loss.1} parent=0 // pred_fallthru
    _
  %v11 = vld [vmem:[%s0] sm:$0xff]
  %v12 = vld [vmem:[%s1] sm:$0xff]
  %v13 = vsub.f32 0.0, %v11
  %v14 = vmin.f32 %v13, 60.0
  %v15 = vmul.f32 %v14, 1.442695
  %v16 = vpow.pop %v15
  %v17 = vadd.f32 %v16, 1.0
  %v18 = vrcp.pop %v17
  %vm19 = vcmp.eq.f32.partialorder %v12, 1.0
  %vm20 = vcmp.eq.f32.partialorder %v12, 0.0
  %v21 = vsel %vm19, %v18, 0.0
  %v22 = vrot.slane %v21, 4
  %v23 = vadd.f32 %v21, %v22
  %v24 = vrot.slane %v23, 2
  %v25 = vadd.f32 %v23, %v24
  %v26 = vrot.slane %v25, 1
  %v27 = vadd.f32 %v25, %v26
  %v28 = vsel %vm19, 1.0, 0.0
  %v29 = vrot.slane %v28, 4
  %v30 = vadd.f32 %v28, %v29
  %v31 = vrot.slane %v30, 2
  %v32 = vadd.f32 %v30, %v31
  %v33 = vrot.slane %v32, 1
  %v34 = vadd.f32 %v32, %v33
  %v35 = vsel %vm20, %v18, 0.0
  %v36 = vrot.slane %v35, 4
  %v37 = vadd.f32 %v35, %v36
  %v38 = vrot.slane %v37, 2
  %v39 = vadd.f32 %v37, %v38
  %v40 = vrot.slane %v39, 1
  %v41 = vadd.f32 %v39, %v40
  %v42 = vsel %vm20, 1.0, 0.0
  %v43 = vrot.slane %v42, 4
  %v44 = vadd.f32 %v42, %v43
  %v45 = vrot.slane %v44, 2
  %v46 = vadd.f32 %v44, %v45
  %v47 = vrot.slane %v46, 1
  %v48 = vadd.f32 %v46, %v47
  %vm49 = vcmask 1040384
  %v50 = vsel %vm49, %v27, %v34
  %vm51 = vcmask 1041408
  %v52 = vsel %vm51, %v50, %v41
  %vm53 = vcmask 1042432
  %v54 = vsel %vm53, %v52, %v48
  %vm55 = vcmask 1043456
  %v56 = vsel %vm55, %v54, 0.0
  %57 = vst [vmem:[%s2] sm:$0xff] %v56
  // Predicated region
  $region10: #{label_distribution_loss.1} parent=0 // pred_check
    _
  $region11: #{label_distribution_loss.1} parent=0 // pred_check_branch
    %59 = sbr.rel (0) target = $region13
  $region12: #{label_distribution_loss.1} parent=0 // pred_region
    _
  $region13: #{label_distribution_loss.1} parent=0 // pred_fallthru
    _
  // Predicated region
  $region14: #{label_distribution_loss.1} parent=0 // pred_check
    _
  $region15: #{label_distribution_loss.1} parent=0 // pred_check_branch
    %61 = sbr.rel (0) target = $region17
  $region16: #{label_distribution_loss.1} parent=0 // pred_region
    _
  $region17: #{label_distribution_loss.1} parent=0 // pred_fallthru
    _

</llo_original>
